<compile_context>
chip_gen: v5e
topology: v5e:2x2
jax: 0.10.0
libtpu: 0.0.40
codegen_flags: <defaults>
</compile_context>

<pallas_src>
import jax
import jax.numpy as jnp
from jax import lax
from jax.experimental import pallas as pl
from jax.experimental.pallas import tpu as pltpu


def _round_up(x, m):
    return (x + m - 1) // m * m


def _vmem_budget():
    """Generation-aware scoped-VMEM budget (bytes), with headroom for temporaries."""
    try:
        cap = int(pltpu.get_tpu_info().vmem_capacity_bytes)
    except Exception:
        cap = 64 * 1024 * 1024          # conservative fallback (v7x per-core VMEM)
    # ~60% of physical VMEM, capped: v5e/v6e (128 MiB) -> ~76 MiB, v7x (64 MiB) -> ~38 MiB.
    return int(min(cap * 0.6, 80 * 1024 * 1024))


def _pad2(x, rows, cols):
    pr, pc = rows - x.shape[0], cols - x.shape[1]
    if pr == 0 and pc == 0:
        return x                        # skip the extra HBM round-trip when aligned
    return jnp.pad(x, ((0, pr), (0, pc)))


# ----------------------------------------------------------------------------
# Kernel 1: fused L2 normalization (+ scale fold), bf16 output.
#   o = (x * scale) / max(||x||_2, 1e-12)
#     = x * (rsqrt(max(sum(x^2), 1e-24)) * scale)        (F.normalize semantics)
# ----------------------------------------------------------------------------
def _normalize_scale_kernel(scale_ref, x_ref, o_ref):
    # scale_ref: (1, 1) f32 SMEM   x_ref: (tr, D_pad) VMEM   o_ref: (tr, D_pad) bf16 VMEM
    x = x_ref[...].astype(jnp.float32)
    inv = lax.rsqrt(jnp.maximum(jnp.sum(x * x, axis=-1, keepdims=True), 1e-24))
    o_ref[...] = (x * (inv * scale_ref[0, 0])).astype(o_ref.dtype)


def _l2_normalize_bf16(x_pad, scale, row_tile, budget):
    r_pad, d_pad = x_pad.shape
    tr = row_tile
    # Footprint: 2x-buffered input tile (<= 4 B/elt) + 2x-buffered bf16 output tile.
    while (2 * tr * d_pad * 4 + 2 * tr * d_pad * 2) > budget and tr % 16 == 0:
        tr //= 2
    cost = pl.CostEstimate(
        flops=3 * r_pad * d_pad,
        transcendentals=r_pad,
        bytes_accessed=int(x_pad.dtype.itemsize) * r_pad * d_pad + 2 * r_pad * d_pad,
    )
    return pl.pallas_call(
        _normalize_scale_kernel,
        out_shape=jax.ShapeDtypeStruct((r_pad, d_pad), jnp.bfloat16),
        grid=(r_pad // tr,),
        in_specs=[
            pl.BlockSpec(memory_space=pltpu.MemorySpace.SMEM),   # scale scalar
            pl.BlockSpec((tr, d_pad), lambda i: (i, 0)),
        ],
        out_specs=pl.BlockSpec((tr, d_pad), lambda i: (i, 0)),
        compiler_params=pltpu.CompilerParams(
            dimension_semantics=("parallel",),
            vmem_limit_bytes=budget,
        ),
        cost_estimate=cost,
    )(scale, x_pad)


# ----------------------------------------------------------------------------
# Kernel 2: tiled scaled-cosine-similarity matmul.
#   o = img_n @ txt_n.T   (bf16 operands, f32 MXU accumulation; scale already folded)
# ----------------------------------------------------------------------------
def _similarity_kernel(img_ref, txt_ref, o_ref):
    o_ref[...] = lax.dot_general(
        img_ref[...], txt_ref[...], (((1,), (1,)), ((), ())),
        preferred_element_type=jnp.float32,
    ).astype(o_ref.dtype)


def alignment_logits(img_emb, txt_emb, logit_scale):
    """img_emb: (Bi, D), txt_emb: (Bt, D), logit_scale: scalar -> (Bi, Bt) f32 logits."""
    bi, d = img_emb.shape
    bt, dt = txt_emb.shape
    assert d == dt, "embedding dims must match"

    budget = _vmem_budget()
    d_pad = _round_up(d, 128)

    # MXU-friendly tiles: tm 256-aligned when large, tn lane-dense (multiple of 128).
    tm = min(_round_up(bi, 8), 512)
    tn = min(_round_up(bt, 128), 2048)

    def footprint(a, b):   # 2x-buffered bf16 input tiles + 2x-buffered f32 output tile
        return 2 * a * d_pad * 2 + 2 * b * d_pad * 2 + 2 * a * b * 4

    while footprint(tm, tn) > budget and (tm > 128 or tn > 512):
        if tn > 512:
            tn = max(512, _round_up(tn // 2, 128))
        elif tm > 128:
            tm = max(128, _round_up(tm // 2, 8))

    bi_pad = _round_up(bi, tm)
    bt_pad = _round_up(bt, tn)

    img_p = _pad2(img_emb, bi_pad, d_pad)
    txt_p = _pad2(txt_emb, bt_pad, d_pad)

    # logit_scale.exp() of the PyTorch forward, folded into the image rows.
    scale = jnp.exp(logit_scale).astype(jnp.float32).reshape(1, 1)
    one = jnp.ones((1, 1), jnp.float32)

    img_n = _l2_normalize_bf16(img_p, scale, tm, budget)   # (bi_pad, d_pad) bf16
    txt_n = _l2_normalize_bf16(txt_p, one, tn, budget)     # (bt_pad, d_pad) bf16

    ni, nj = bi_pad // tm, bt_pad // tn
    cost = pl.CostEstimate(
        flops=2 * bi_pad * bt_pad * d_pad,
        transcendentals=0,
        bytes_accessed=2 * bi_pad * d_pad + 2 * bt_pad * d_pad * ni + 4 * bi_pad * bt_pad,
    )

    out = pl.pallas_call(
        _similarity_kernel,
        out_shape=jax.ShapeDtypeStruct((bi_pad, bt_pad), jnp.float32),
        grid=(ni, nj),                                   # i = image tiles (outer), j = text tiles
        in_specs=[
            pl.BlockSpec((tm, d_pad), lambda i, j: (i, 0)),   # invariant along inner j axis
            pl.BlockSpec((tn, d_pad), lambda i, j: (j, 0)),
        ],
        out_specs=pl.BlockSpec((tm, tn), lambda i, j: (i, j)),
        compiler_params=pltpu.CompilerParams(
            dimension_semantics=("parallel", "parallel"),
            vmem_limit_bytes=budget,
        ),
        cost_estimate=cost,
    )(img_n, txt_n)

    if bi_pad != bi or bt_pad != bt:
        out = out[:bi, :bt]
    return out


# ----------------------------------------------------------------------------
# Frozen encoder stand-ins (plain JAX glue).
# TODO(synk): the real image_model / text_model (e.g. CLIP vision & text towers) are
#             external nn.Modules passed into ImageTextAlignmentModel and are not
#             translated; they are replaced by deterministic frozen projections that
#             produce (B, embedding_dim) features.
# ----------------------------------------------------------------------------
def image_model_stub(image_inputs, params):
    bi = image_inputs.shape[0]
    x = image_inputs.reshape(bi, -1)
    return x @ params["w_img"]


def text_model_stub(input_ids, params):
    emb = jnp.take(params["token_embed"], input_ids, axis=0)   # (Bt, S, E)
    feats = jnp.mean(emb, axis=1)                              # (Bt, E)
    return feats @ params["w_txt"]


def image_text_alignment_forward(image_inputs, text_inputs, params):
    img_emb = image_model_stub(image_inputs, params)
    txt_emb = text_model_stub(text_inputs, params)
    return alignment_logits(img_emb, txt_emb, params["logit_scale"])


# ----------------------------------------------------------------------------
# main
# ----------------------------------------------------------------------------
if __name__ == "__main__":
    Bi, C, H, W = 6, 3, 16, 16      # image batch (tests row padding 6 -> 8)
    Bt, S = 5, 12                   # text batch (tests lane padding 5 -> 128), seq len
    VOCAB, E_TXT = 1000, 64
    D = 128                         # embedding_dim

    key = jax.random.PRNGKey(0)
    k_img, k_ids, k_emb, k_wi, k_wt = jax.random.split(key, 5)

    image_inputs = jax.random.normal(k_img, (Bi, C, H, W), jnp.float32)
    text_inputs = jax.random.randint(k_ids, (Bt, S), 0, VOCAB, dtype=jnp.int32)

    params = {
        "w_img": jax.random.normal(k_wi, (C * H * W, D), jnp.float32)
                 * (1.0 / jnp.sqrt(C * H * W)),
        "token_embed": jax.random.normal(k_emb, (VOCAB, E_TXT), jnp.float32) * 0.02,
        "w_txt": jax.random.normal(k_wt, (E_TXT, D), jnp.float32)
                 * (1.0 / jnp.sqrt(E_TXT)),
        # nn.Parameter(torch.ones([]) * log(1/0.07))
        "logit_scale": jnp.array(jnp.log(1.0 / 0.07), jnp.float32),
    }

    logits = jax.block_until_ready(
        image_text_alignment_forward(image_inputs, text_inputs, params))

    # sanity: shape, finiteness
    assert logits.shape == (Bi, Bt)
    assert bool(jnp.all(jnp.isfinite(logits)))

    # reference check against the plain-JAX f32 forward; tolerance covers bf16 MXU
    # operands (logits range is roughly +-exp(log(1/0.07)) ~= +-14.3).
    img_emb = image_model_stub(image_inputs, params)
    txt_emb = text_model_stub(text_inputs, params)
    img_n = img_emb / jnp.maximum(jnp.linalg.norm(img_emb, axis=-1, keepdims=True), 1e-12)
    txt_n = txt_emb / jnp.maximum(jnp.linalg.norm(txt_emb, axis=-1, keepdims=True), 1e-12)
    ref = jnp.exp(params["logit_scale"]) * (img_n @ txt_n.T)
    assert bool(jnp.all(jnp.abs(logits - ref) < 0.12))

    print("KERNEL_OK")
</pallas_src>

<mosaic_0001>
module attributes {stable_mosaic.version = 11 : i64} {
  func.func @_normalize_scale_kernel(%arg0: i32, %arg1: memref<1x1xf32, #tpu.memory_space<smem>>, %arg2: memref<8x128xf32, #tpu.memory_space<vmem>>, %arg3: memref<8x128xbf16, #tpu.memory_space<vmem>>) attributes {dimension_semantics = [#tpu.dimension_semantics<parallel>], iteration_bounds = array<i64: 1>, scalar_prefetch = 0 : i64, scratch_operands = 0 : i64, tpu.core_type = #tpu.core_type<tc>, window_params = [{transform_indices = @transform_0, window_bounds = array<i64: 1, 1>}, {transform_indices = @transform_1, window_bounds = array<i64: 8, 128>}, {transform_indices = @transform_2, window_bounds = array<i64: 8, 128>}]} {
    %c0 = arith.constant 0 : index
    %c0_0 = arith.constant 0 : index
    %0 = vector.load %arg2[%c0, %c0_0] : memref<8x128xf32, #tpu.memory_space<vmem>>, vector<8x128xf32>
    %1 = arith.mulf %0, %0 : vector<8x128xf32>
    %cst = arith.constant dense<0.000000e+00> : vector<8xf32>
    %2 = vector.multi_reduction <add>, %1, %cst [1] : vector<8x128xf32> to vector<8xf32>
    %3 = vector.shape_cast %2 : vector<8xf32> to vector<8x1xf32>
    %cst_1 = arith.constant 1.000000e-24 : f32
    %4 = vector.broadcast %cst_1 : f32 to vector<8x1xf32>
    %5 = arith.maximumf %3, %4 : vector<8x1xf32>
    %6 = math.rsqrt %5 : vector<8x1xf32>
    %c0_2 = arith.constant 0 : index
    %c0_3 = arith.constant 0 : index
    %7 = memref.load %arg1[%c0_2, %c0_3] : memref<1x1xf32, #tpu.memory_space<smem>>
    %8 = vector.broadcast %7 : f32 to vector<8x1xf32>
    %9 = arith.mulf %6, %8 : vector<8x1xf32>
    %10 = vector.broadcast %9 : vector<8x1xf32> to vector<8x128xf32>
    %11 = arith.mulf %0, %10 : vector<8x128xf32>
    %12 = arith.truncf %11 : vector<8x128xf32> to vector<8x128xbf16>
    %c0_4 = arith.constant 0 : index
    %c0_5 = arith.constant 0 : index
    %13 = vector.load %arg3[%c0_4, %c0_5] : memref<8x128xbf16, #tpu.memory_space<vmem>>, vector<8x128xbf16>
    tpu.vector_store %arg3[%c0_4, %c0_5], %12 {strides = array<i32>} : memref<8x128xbf16, #tpu.memory_space<vmem>>, vector<8x128xbf16>,
    return
  }
  func.func @transform_0(%arg0: i32) -> (i32, i32) {
    %c0_i32 = arith.constant 0 : i32
    %c0_i32_0 = arith.constant 0 : i32
    %c0_i32_1 = arith.constant 0 : i32
    return %c0_i32, %c0_i32_0 : i32, i32
  }
  func.func @transform_1(%arg0: i32) -> (i32, i32) {
    %c0_i32 = arith.constant 0 : i32
    %c0_i32_0 = arith.constant 0 : i32
    return %arg0, %c0_i32 : i32, i32
  }
  func.func @transform_2(%arg0: i32) -> (i32, i32) {
    %c0_i32 = arith.constant 0 : i32
    %c0_i32_0 = arith.constant 0 : i32
    return %arg0, %c0_i32 : i32, i32
  }
}

</mosaic_0001>

<llo_original>
// kernel: tpu_custom_call.1
$region0: #{tpu_custom_call.1}
  #allocation0 [shape = 'u32[]', space=smem, size = 0x4, offset = 0x4, fixed_abs, tag = 'smem constant byte address 0x4 - core index']
  #allocation1 [shape = 'u32[72,128]{1,0:T(1,128)}', space=vmem, size = 0x9000, scoped, tag = 'internal scratch']
  #allocation2 [shape = 'f32[1,1]{1,0:T(1,128)S(6)}', space=smem, size = 0x200, scoped, tag = 'scoped memory for tpu_custom_call.1']
  %s0 = inlined_call_operand.<no memory space> [shape: f32[1,1], index: 0, kind: input, shape index: {}]
  %s1 = inlined_call_operand.hbm [shape: f32[8,128], index: 1, kind: input, shape index: {}]
  %s2 = inlined_call_operand.hbm [shape: bf16[8,128], index: 2, kind: output, shape index: {}]
  %s3 = sld [smem:[#allocation0]]
  $region22: #{tpu_custom_call.1} parent=0
    _
  %s5 = ssub.s32 1, %s3
  %s6 = scalar_select 0, %s5, %s3
  %7 = sst [smem:[#allocation2]] %s0
  $region1: #{tpu_custom_call.1} parent=0
    #allocation3 [shape = 'u8[4096]{0}', space=vmem, size = 0x1000, scoped, tag = 'input window, operand 1, single buffered']
    #allocation4 [shape = 's32[1]{0}', space=sflag, size = 0x4, scoped, tag = 'scoped memory for tpu_custom_call.1']
    #allocation5 [shape = 's32[1]{0}', space=sflag, size = 0x4, scoped, tag = 'scoped memory for tpu_custom_call.1']
    #allocation6 [shape = 'u8[2048]{0}', space=vmem, size = 0x800, scoped, tag = 'output window, operand 0, single buffered']
    %8 = vsyncpa [#allocation4], 0
    %9 = vsyncpa [#allocation5], 0
    // Predicated region
    $region2: #{tpu_custom_call.1} parent=1 // pred_check
      _
    $region3: #{tpu_custom_call.1} parent=1 // pred_check_branch
      %11 = sbr.rel (0) target = $region5
    $region4: #{tpu_custom_call.1} parent=1 // pred_region
      _
    $region5: #{tpu_custom_call.1} parent=1 // pred_fallthru
      _
    // Predicated region
    $region6: #{tpu_custom_call.1} parent=1 // pred_check
      _
    $region7: #{tpu_custom_call.1} parent=1 // pred_check_branch
      %13 = sbr.rel (0) target = $region9
    $region8: #{tpu_custom_call.1} parent=1 // pred_region
      %15 = vsyncadd [#allocation4], 0
      %s17 = sshll.u32 %s1, 4
      %s18 = int_to_ptr.hbm [resolvable:$true] %s17
      %s19 = sshll.u32 [#allocation3], 4
      %s20 = int_to_ptr.vmem [resolvable:$true] %s19
      %22 = dma.hbm_to_vmem [thread:$0]  %s18, 128, %s20, [#allocation4]
    $region9: #{tpu_custom_call.1} parent=1 // pred_fallthru
      _
    // Predicated region
    $region10: #{tpu_custom_call.1} parent=1 // pred_check
      _
    $region11: #{tpu_custom_call.1} parent=1 // pred_check_branch
      %24 = sbr.rel (0) target = $region13
    $region12: #{tpu_custom_call.1} parent=1 // pred_region
      %26 = dma.done [#allocation4], 128
    $region13: #{tpu_custom_call.1} parent=1 // pred_fallthru
      _
    %v27 = vld [vmem:[#allocation3] sm:$0xff]
    %v28 = vmul.f32 %v27, %v27
    %29 = vadd.xlane.f32.xlu0 %v28
    %v30 = vpop.xlane.xlu0 %29
    %v31 = vmax.f32 %v30, 1e-24
    %v32 = vrsqrt.pop %v31
    %v33 = vmul.f32 %v32, %v31
    %v34 = vmul.f32 %v33, %v32
    %v35 = vmul.f32 0.5, %v34
    %v36 = vsub.f32 1.5, %v35
    %v37 = vmul.f32 %v32, %v36
    %vm38 = vweird.f32 %v31
    %vm39 = vweird.f32 %v32
    %vm40 = vmor %vm38, %vm39
    %v41 = vsel %vm40, %v32, %v37
    %s42 = sld [smem:[#allocation2]]
    %v43 = vstv %s42
    %v44 = vmul.f32 %v41, %v43
    %v45 = vmul.f32 %v27, %v44
    %v46 = vpack.c.bf16 %v45, %v45
    %47 = vst [vmem:[#allocation6] sm:$0xf] %v46
    // Predicated region
    $region14: #{tpu_custom_call.1} parent=1 // pred_check
      _
    $region15: #{tpu_custom_call.1} parent=1 // pred_check_branch
      %49 = sbr.rel (0) target = $region17
    $region16: #{tpu_custom_call.1} parent=1 // pred_region
      %51 = vsyncadd [#allocation5], 0
      %s53 = sshll.u32 [#allocation6], 4
      %s54 = int_to_ptr.vmem [resolvable:$true] %s53
      %s55 = sshll.u32 %s2, 4
      %s56 = int_to_ptr.hbm [resolvable:$true] %s55
      %58 = dma.vmem_to_hbm [thread:$0]  %s54, 64, %s56, [#allocation5]
    $region17: #{tpu_custom_call.1} parent=1 // pred_fallthru
      _
    // Predicated region
    $region18: #{tpu_custom_call.1} parent=1 // pred_check
      _
    $region19: #{tpu_custom_call.1} parent=1 // pred_check_branch
      %60 = sbr.rel (0) target = $region21
    $region20: #{tpu_custom_call.1} parent=1 // pred_region
      %62 = dma.done [#allocation5], 64
    $region21: #{tpu_custom_call.1} parent=1 // pred_fallthru
      _
    %63 = vsyncpa [#allocation4], 1
    %64 = vsyncpa [#allocation5], 1

</llo_original>
